<compile_context>
chip_gen: v7x
topology: tpu7x:2x2x1
jax: 0.10.0
libtpu: 0.0.40
codegen_flags: <defaults>
</compile_context>

<pallas_src>
import jax
import jax.numpy as jnp
from jax.experimental import pallas as pl
from jax.experimental.pallas import tpu as pltpu

HIDDEN = 128    # embedding size produced by ehr_model
NCLASS = 2      # true classifier output width
OUT_PAD = 128   # lane-dense padded output width (kernel-side)


def _round_up(n, m):
    return (n + m - 1) // m * m


# ---------------------------------------------------------------------------
# Kernel
# ---------------------------------------------------------------------------
def ehr_classifier_kernel(x_ref, w1_ref, b1_ref, w2_ref, b2_ref, out_ref,
                          acc_ref):
    # x_ref:  (TB, TS, F)      one (batch-tile, time-tile) slab
    # w1_ref: (F, 128)         mean scale 1/S already folded in
    # b1_ref: (1, 128)
    # w2_ref: (128, 128)       columns [NCLASS:] are exact zeros (lane pad)
    # b2_ref: (1, 128)
    # out_ref:(TB, 128)        lane-dense; wrapper slices [:, :NCLASS]
    # acc_ref:(TB, F) f32      time-sum accumulator (persists across k)
    k = pl.program_id(1)

    @pl.when(k == 0)
    def _init():
        acc_ref[...] = jnp.zeros_like(acc_ref)

    # Accumulate the time-sum for this time tile into the f32 scratch.
    # (For f32 inputs the astype is a no-op; for bf16 inputs only the widened
    #  reduce result lands in the persistent f32 accumulator.)
    acc_ref[...] += jnp.sum(x_ref[...].astype(jnp.float32), axis=1)

    @pl.when(k == pl.num_programs(1) - 1)
    def _finalize():
        pooled = acc_ref[...]                                   # (TB, F), f32
        # ehr_model: Linear(F, 128) (+ folded 1/S scale) + ReLU   (MXU + VPU)
        h = jnp.dot(pooled, w1_ref[...],
                    preferred_element_type=jnp.float32) + b1_ref[...]
        h = jnp.maximum(h, 0.0)
        # classifier: Linear(128, 2), lane-padded to 128 columns  (MXU)
        logits = jnp.dot(h, w2_ref[...],
                         preferred_element_type=jnp.float32) + b2_ref[...]
        out_ref[...] = logits.astype(out_ref.dtype)


# ---------------------------------------------------------------------------
# One-time parameter preparation (PyTorch (out,in) layout -> kernel layout)
# ---------------------------------------------------------------------------
def prepare_params(w1, b1, w2, b2, seq_len):
    """w1:(128,F) b1:(128,) w2:(2,128) b2:(2,)  ->  kernel parameters."""
    # Fold the 1/S mean scale into w1 so the kernel only needs a sum.
    w1k = (jnp.asarray(w1, jnp.float32).T) / float(seq_len)          # (F, 128)
    b1k = jnp.asarray(b1, jnp.float32).reshape(1, HIDDEN)            # (1, 128)
    # Lane-dense pad of the classifier to 128 output columns (exact zeros).
    w2k = jnp.zeros((HIDDEN, OUT_PAD), jnp.float32)
    w2k = w2k.at[:, :NCLASS].set(jnp.asarray(w2, jnp.float32).T)     # (128, 128)
    b2k = jnp.zeros((1, OUT_PAD), jnp.float32)
    b2k = b2k.at[:, :NCLASS].set(jnp.asarray(b2, jnp.float32).reshape(1, NCLASS))
    return w1k, b1k, w2k, b2k


# ---------------------------------------------------------------------------
# Wrapper
# ---------------------------------------------------------------------------
def ehr_classifier_forward(x, w1k, b1k, w2k, b2k, *, tb_max=128, ts_max=128):
    B, S, F = x.shape

    # Tile sizes: multiples of 8 (f32 sublane); capped so the double-buffered
    # x slab + scratch stays well inside the 32 MiB scoped VMEM default on
    # every generation (incl. v7x's 64 MiB physical VMEM).
    tb = min(tb_max, _round_up(B, 8))
    ts = min(ts_max, _round_up(S, 8))
    b_pad = _round_up(B, tb)
    s_pad = _round_up(S, ts)
    if (b_pad, s_pad) != (B, S):
        # Zero padding is exact: padded time steps add 0 to the sum (the true
        # 1/S is folded into w1); padded batch rows are sliced off below.
        x = jnp.pad(x, ((0, b_pad - B), (0, s_pad - S), (0, 0)))

    grid = (pl.cdiv(b_pad, tb), pl.cdiv(s_pad, ts))
    itemsize = jnp.dtype(x.dtype).itemsize

    out = pl.pallas_call(
        ehr_classifier_kernel,
        out_shape=jax.ShapeDtypeStruct((b_pad, OUT_PAD), jnp.float32),
        grid_spec=pltpu.PrefetchScalarGridSpec(
            num_scalar_prefetch=0,
            grid=grid,
            in_specs=[
                pl.BlockSpec((tb, ts, F), lambda i, k: (i, k, 0)),       # x
                pl.BlockSpec((F, HIDDEN), lambda i, k: (0, 0)),          # w1
                pl.BlockSpec((1, HIDDEN), lambda i, k: (0, 0)),          # b1
                pl.BlockSpec((HIDDEN, OUT_PAD), lambda i, k: (0, 0)),    # w2
                pl.BlockSpec((1, OUT_PAD), lambda i, k: (0, 0)),         # b2
            ],
            out_specs=pl.BlockSpec((tb, OUT_PAD), lambda i, k: (i, 0)),
            scratch_shapes=[pltpu.VMEM((tb, F), jnp.float32)],
        ),
        compiler_params=pltpu.CompilerParams(
            dimension_semantics=("parallel", "arbitrary"),
        ),
        cost_estimate=pl.CostEstimate(
            flops=(b_pad * s_pad * F                       # time-sum
                   + 2 * b_pad * F * HIDDEN                # Linear(F,128)
                   + 2 * b_pad * HIDDEN * OUT_PAD),        # Linear(128,128pad)
            transcendentals=0,
            bytes_accessed=(b_pad * s_pad * F * itemsize
                            + (F * HIDDEN + HIDDEN + HIDDEN * OUT_PAD + OUT_PAD) * 4
                            + b_pad * OUT_PAD * 4),
        ),
    )(x, w1k, b1k, w2k, b2k)

    return out[:B, :NCLASS]


# ---------------------------------------------------------------------------
# Pure-JAX reference (PyTorch (out, in) weight layout, unscaled/unpadded)
# ---------------------------------------------------------------------------
def reference_forward(x, w1_t, b1_t, w2_t, b2_t):
    pooled = jnp.mean(x.astype(jnp.float32), axis=1)
    h = jnp.maximum(pooled @ w1_t.T + b1_t, 0.0)
    return h @ w2_t.T + b2_t


if __name__ == "__main__":
    # Small shapes: batch=2, seq=8, features=32.
    B, S, F = 2, 8, 32

    key = jax.random.PRNGKey(0)
    kx, kw1, kb1, kw2, kb2 = jax.random.split(key, 5)

    x = jax.random.normal(kx, (B, S, F), dtype=jnp.float32)

    # Deterministic synthetic parameters in PyTorch (out_features, in_features) layout.
    w1_t = jax.random.normal(kw1, (HIDDEN, F), dtype=jnp.float32) * 0.05
    b1_t = jax.random.normal(kb1, (HIDDEN,), dtype=jnp.float32) * 0.01
    w2_t = jax.random.normal(kw2, (NCLASS, HIDDEN), dtype=jnp.float32) * 0.05
    b2_t = jax.random.normal(kb2, (NCLASS,), dtype=jnp.float32) * 0.01

    params = prepare_params(w1_t, b1_t, w2_t, b2_t, seq_len=S)

    out = ehr_classifier_forward(x, *params)
    out = jax.block_until_ready(out)

    ref = reference_forward(x, w1_t, b1_t, w2_t, b2_t)
    assert out.shape == (B, NCLASS)
    assert jnp.allclose(out, ref, atol=1e-4, rtol=1e-4)

    print("KERNEL_OK")
</pallas_src>

<mosaic_0001>
module attributes {stable_mosaic.version = 11 : i64} {
  func.func @ehr_classifier_kernel(%arg0: i32, %arg1: i32, %arg2: memref<8x8x32xf32, #tpu.memory_space<vmem>>, %arg3: memref<32x128xf32, #tpu.memory_space<vmem>>, %arg4: memref<1x128xf32, #tpu.memory_space<vmem>>, %arg5: memref<128x128xf32, #tpu.memory_space<vmem>>, %arg6: memref<1x128xf32, #tpu.memory_space<vmem>>, %arg7: memref<8x128xf32, #tpu.memory_space<vmem>>, %arg8: memref<8x32xf32, #tpu.memory_space<vmem>>) attributes {dimension_semantics = [#tpu.dimension_semantics<parallel>, #tpu.dimension_semantics<arbitrary>], iteration_bounds = array<i64: 1, 1>, scalar_prefetch = 0 : i64, scratch_operands = 1 : i64, tpu.core_type = #tpu.core_type<tc>, window_params = [{transform_indices = @transform_0, window_bounds = array<i64: 8, 8, 32>}, {pipeline_mode = #tpu.pipeline_mode<synchronous>, transform_indices = @transform_1, window_bounds = array<i64: 32, 128>}, {pipeline_mode = #tpu.pipeline_mode<synchronous>, transform_indices = @transform_2, window_bounds = array<i64: 1, 128>}, {pipeline_mode = #tpu.pipeline_mode<synchronous>, transform_indices = @transform_3, window_bounds = array<i64: 128, 128>}, {pipeline_mode = #tpu.pipeline_mode<synchronous>, transform_indices = @transform_4, window_bounds = array<i64: 1, 128>}, {transform_indices = @transform_5, window_bounds = array<i64: 8, 128>}]} {
    %c0_i32 = arith.constant 0 : i32
    %0 = arith.cmpi eq, %arg1, %c0_i32 : i32
    %1 = arith.extui %0 : i1 to i32
    %c0_i32_0 = arith.constant 0 : i32
    %2 = arith.cmpi ne, %1, %c0_i32_0 : i32
    scf.if %2 {
      %cst_9 = arith.constant 0.000000e+00 : f32
      %11 = vector.broadcast %cst_9 : f32 to vector<8x32xf32>
      %c0_10 = arith.constant 0 : index
      %c0_11 = arith.constant 0 : index
      %12 = vector.load %arg8[%c0_10, %c0_11] : memref<8x32xf32, #tpu.memory_space<vmem>>, vector<8x32xf32>
      tpu.vector_store %arg8[%c0_10, %c0_11], %11 {strides = array<i32>} : memref<8x32xf32, #tpu.memory_space<vmem>>, vector<8x32xf32>,
    } else {
    }
    %c0 = arith.constant 0 : index
    %c0_1 = arith.constant 0 : index
    %3 = vector.load %arg8[%c0, %c0_1] : memref<8x32xf32, #tpu.memory_space<vmem>>, vector<8x32xf32>
    %c0_2 = arith.constant 0 : index
    %c0_3 = arith.constant 0 : index
    %c0_4 = arith.constant 0 : index
    %4 = vector.load %arg2[%c0_2, %c0_3, %c0_4] : memref<8x8x32xf32, #tpu.memory_space<vmem>>, vector<8x8x32xf32>
    %cst = arith.constant dense<0.000000e+00> : vector<8x32xf32>
    %5 = vector.multi_reduction <add>, %4, %cst [1] : vector<8x8x32xf32> to vector<8x32xf32>
    %6 = arith.addf %3, %5 : vector<8x32xf32>
    %c0_5 = arith.constant 0 : index
    %c0_6 = arith.constant 0 : index
    %7 = vector.load %arg8[%c0_5, %c0_6] : memref<8x32xf32, #tpu.memory_space<vmem>>, vector<8x32xf32>
    tpu.vector_store %arg8[%c0_5, %c0_6], %6 {strides = array<i32>} : memref<8x32xf32, #tpu.memory_space<vmem>>, vector<8x32xf32>,
    %c0_i32_7 = arith.constant 0 : i32
    %8 = arith.cmpi eq, %arg1, %c0_i32_7 : i32
    %9 = arith.extui %8 : i1 to i32
    %c0_i32_8 = arith.constant 0 : i32
    %10 = arith.cmpi ne, %9, %c0_i32_8 : i32
    scf.if %10 {
      %c0_9 = arith.constant 0 : index
      %c0_10 = arith.constant 0 : index
      %11 = vector.load %arg8[%c0_9, %c0_10] : memref<8x32xf32, #tpu.memory_space<vmem>>, vector<8x32xf32>
      %c0_11 = arith.constant 0 : index
      %c0_12 = arith.constant 0 : index
      %12 = vector.load %arg3[%c0_11, %c0_12] : memref<32x128xf32, #tpu.memory_space<vmem>>, vector<32x128xf32>
      %cst_13 = arith.constant dense<0.000000e+00> : vector<8x128xf32>
      %13 = tpu.matmul %11, %12, %cst_13 {dimension_numbers = #tpu.dot_dimension_numbers<[1], [0], [0], [1], [0, 0, 1, 1], [], []>} : vector<8x32xf32>, vector<32x128xf32>, vector<8x128xf32> -> vector<8x128xf32>
      %c0_14 = arith.constant 0 : index
      %c0_15 = arith.constant 0 : index
      %14 = vector.load %arg4[%c0_14, %c0_15] : memref<1x128xf32, #tpu.memory_space<vmem>>, vector<1x128xf32>
      %15 = vector.broadcast %14 : vector<1x128xf32> to vector<8x128xf32>
      %16 = arith.addf %13, %15 : vector<8x128xf32>
      %cst_16 = arith.constant 0.000000e+00 : f32
      %17 = vector.broadcast %cst_16 : f32 to vector<8x128xf32>
      %18 = arith.maximumf %16, %17 : vector<8x128xf32>
      %c0_17 = arith.constant 0 : index
      %c0_18 = arith.constant 0 : index
      %19 = vector.load %arg5[%c0_17, %c0_18] : memref<128x128xf32, #tpu.memory_space<vmem>>, vector<128x128xf32>
      %cst_19 = arith.constant dense<0.000000e+00> : vector<8x128xf32>
      %20 = tpu.matmul %18, %19, %cst_19 {dimension_numbers = #tpu.dot_dimension_numbers<[1], [0], [0], [1], [0, 0, 1, 1], [], []>} : vector<8x128xf32>, vector<128x128xf32>, vector<8x128xf32> -> vector<8x128xf32>
      %c0_20 = arith.constant 0 : index
      %c0_21 = arith.constant 0 : index
      %21 = vector.load %arg6[%c0_20, %c0_21] : memref<1x128xf32, #tpu.memory_space<vmem>>, vector<1x128xf32>
      %22 = vector.broadcast %21 : vector<1x128xf32> to vector<8x128xf32>
      %23 = arith.addf %20, %22 : vector<8x128xf32>
      %c0_22 = arith.constant 0 : index
      %c0_23 = arith.constant 0 : index
      %24 = vector.load %arg7[%c0_22, %c0_23] : memref<8x128xf32, #tpu.memory_space<vmem>>, vector<8x128xf32>
      tpu.vector_store %arg7[%c0_22, %c0_23], %23 {strides = array<i32>} : memref<8x128xf32, #tpu.memory_space<vmem>>, vector<8x128xf32>,
    } else {
    }
    return
  }
  func.func @transform_0(%arg0: i32, %arg1: i32) -> (i32, i32, i32) {
    %c0_i32 = arith.constant 0 : i32
    %c0_i32_0 = arith.constant 0 : i32
    return %arg0, %arg1, %c0_i32 : i32, i32, i32
  }
  func.func @transform_1(%arg0: i32, %arg1: i32) -> (i32, i32) {
    %c0_i32 = arith.constant 0 : i32
    %c0_i32_0 = arith.constant 0 : i32
    %c0_i32_1 = arith.constant 0 : i32
    return %c0_i32, %c0_i32_0 : i32, i32
  }
  func.func @transform_2(%arg0: i32, %arg1: i32) -> (i32, i32) {
    %c0_i32 = arith.constant 0 : i32
    %c0_i32_0 = arith.constant 0 : i32
    %c0_i32_1 = arith.constant 0 : i32
    return %c0_i32, %c0_i32_0 : i32, i32
  }
  func.func @transform_3(%arg0: i32, %arg1: i32) -> (i32, i32) {
    %c0_i32 = arith.constant 0 : i32
    %c0_i32_0 = arith.constant 0 : i32
    %c0_i32_1 = arith.constant 0 : i32
    return %c0_i32, %c0_i32_0 : i32, i32
  }
  func.func @transform_4(%arg0: i32, %arg1: i32) -> (i32, i32) {
    %c0_i32 = arith.constant 0 : i32
    %c0_i32_0 = arith.constant 0 : i32
    %c0_i32_1 = arith.constant 0 : i32
    return %c0_i32, %c0_i32_0 : i32, i32
  }
  func.func @transform_5(%arg0: i32, %arg1: i32) -> (i32, i32) {
    %c0_i32 = arith.constant 0 : i32
    %c0_i32_0 = arith.constant 0 : i32
    return %arg0, %c0_i32 : i32, i32
  }
}

</mosaic_0001>

<llo_original>
// kernel: tpu_custom_call.1
$region0: #{tpu_custom_call.1}
  #allocation0 [shape = 'u32[]', space=smem, size = 0x4, offset = 0x4, fixed_abs, tag = 'smem constant byte address 0x4 - core index']
  #allocation1 [shape = 'u32[144,128]{1,0:T(1,128)}', space=vmem, size = 0x12000, scoped, tag = 'internal scratch']
  #allocation2 [shape = 'f32[8,32]{1,0:T(8,128)}', space=vmem, size = 0x1000, scoped, tag = 'scratch operand']
  %s0 = inlined_call_operand.hbm [shape: f32[8,8,32], index: 0, kind: input, shape index: {}]
  %s1 = inlined_call_operand.hbm [shape: f32[32,128], index: 1, kind: input, shape index: {}]
  %s2 = inlined_call_operand.vmem [shape: f32[1,128], index: 2, kind: input, shape index: {}]
  %s3 = inlined_call_operand.hbm [shape: f32[128,128], index: 3, kind: input, shape index: {}]
  %s4 = inlined_call_operand.vmem [shape: f32[1,128], index: 4, kind: input, shape index: {}]
  %s5 = inlined_call_operand.hbm [shape: f32[8,128], index: 5, kind: output, shape index: {}]
  %s6 = sld [smem:[#allocation0]]
  $region50: #{tpu_custom_call.1} parent=0
    _
  %s8 = ssub.s32 1, %s6
  %s9 = scalar_select 0, %s8, %s6
  $region1: #{tpu_custom_call.1} parent=0
    #allocation3 [shape = 'u8[32768]{0}', space=vmem, size = 0x8000, scoped, tag = 'input window, operand 0, single buffered']
    #allocation4 [shape = 's32[1]{0}', space=sflag, size = 0x4, scoped, tag = 'scoped memory for tpu_custom_call.1']
    #allocation5 [shape = 's32[1]{0}', space=sflag, size = 0x4, scoped, tag = 'scoped memory for tpu_custom_call.1']
    #allocation6 [shape = 'u8[16384]{0}', space=vmem, size = 0x4000, scoped, tag = 'input window, operand 1, single buffered']
    #allocation7 [shape = 's32[1]{0}', space=sflag, size = 0x4, scoped, tag = 'scoped memory for tpu_custom_call.1']
    #allocation8 [shape = 'u8[65536]{0}', space=vmem, size = 0x10000, scoped, tag = 'input window, operand 3, single buffered']
    #allocation9 [shape = 'u8[4096]{0}', space=vmem, size = 0x1000, scoped, tag = 'output window, operand 0, single buffered']
    %10 = vsyncpa [#allocation4], 0
    %11 = vsyncpa [#allocation7], 0
    %12 = vsyncpa [#allocation5], 0
    // Predicated region
    $region2: #{tpu_custom_call.1} parent=1 // pred_check
      _
    $region3: #{tpu_custom_call.1} parent=1 // pred_check_branch
      %14 = sbr.rel (0) target = $region5
    $region4: #{tpu_custom_call.1} parent=1 // pred_region
      %s16 = ssub.s32 1024, 1024
      %17 = vsyncadd [#allocation4], %s16
      %s18 = sshll.u32 [#allocation3], 4
      %s19 = int_to_ptr.vmem [resolvable:$true] %s18
      %24 = dma.hbm_to_vmem [thread:$0]  %s0, 1024, %s19, [#allocation4], 128, 128, 8
    $region5: #{tpu_custom_call.1} parent=1 // pred_fallthru
      _
    // Predicated region
    $region6: #{tpu_custom_call.1} parent=1 // pred_check
      _
    $region7: #{tpu_custom_call.1} parent=1 // pred_check_branch
      %26 = sbr.rel (0) target = $region9
    $region8: #{tpu_custom_call.1} parent=1 // pred_region
      %s28 = ssub.s32 512, 512
      %29 = vsyncadd [#allocation7], %s28
      %s30 = sshll.u32 [#allocation6], 4
      %s31 = int_to_ptr.vmem [resolvable:$true] %s30
      %36 = dma.hbm_to_vmem [thread:$0]  %s1, 512, %s31, [#allocation7], 128, 128, 8
    $region9: #{tpu_custom_call.1} parent=1 // pred_fallthru
      _
    // Predicated region
    $region10: #{tpu_custom_call.1} parent=1 // pred_check
      _
    $region11: #{tpu_custom_call.1} parent=1 // pred_check_branch
      %38 = sbr.rel (0) target = $region13
    $region12: #{tpu_custom_call.1} parent=1 // pred_region
      _
    $region13: #{tpu_custom_call.1} parent=1 // pred_fallthru
      _
    // Predicated region
    $region14: #{tpu_custom_call.1} parent=1 // pred_check
      _
    $region15: #{tpu_custom_call.1} parent=1 // pred_check_branch
      %40 = sbr.rel (0) target = $region17
    $region16: #{tpu_custom_call.1} parent=1 // pred_region
      %s42 = ssub.s32 2048, 2048
      %43 = vsyncadd [#allocation7], %s42
      %s44 = sshll.u32 [#allocation8], 4
      %s45 = int_to_ptr.vmem [resolvable:$true] %s44
      %50 = dma.hbm_to_vmem [thread:$0]  %s3, 2048, %s45, [#allocation7], 128, 128, 8
    $region17: #{tpu_custom_call.1} parent=1 // pred_fallthru
      _
    // Predicated region
    $region18: #{tpu_custom_call.1} parent=1 // pred_check
      _
    $region19: #{tpu_custom_call.1} parent=1 // pred_check_branch
      %52 = sbr.rel (0) target = $region21
    $region20: #{tpu_custom_call.1} parent=1 // pred_region
      _
    $region21: #{tpu_custom_call.1} parent=1 // pred_fallthru
      _
    // Predicated region
    $region22: #{tpu_custom_call.1} parent=1 // pred_check
      _
    $region23: #{tpu_custom_call.1} parent=1 // pred_check_branch
      %54 = sbr.rel (0) target = $region25
    $region24: #{tpu_custom_call.1} parent=1 // pred_region
      %55 = dma.done [#allocation4], 1024
    $region25: #{tpu_custom_call.1} parent=1 // pred_fallthru
      _
    // Predicated region
    $region26: #{tpu_custom_call.1} parent=1 // pred_check
      _
    $region27: #{tpu_custom_call.1} parent=1 // pred_check_branch
      %57 = sbr.rel (0) target = $region29
    $region28: #{tpu_custom_call.1} parent=1 // pred_region
      %58 = dma.done [#allocation7], 512
    $region29: #{tpu_custom_call.1} parent=1 // pred_fallthru
      _
    // Predicated region
    $region30: #{tpu_custom_call.1} parent=1 // pred_check
      _
    $region31: #{tpu_custom_call.1} parent=1 // pred_check_branch
      %60 = sbr.rel (0) target = $region33
    $region32: #{tpu_custom_call.1} parent=1 // pred_region
      %61 = dma.done [#allocation7], 2048
    $region33: #{tpu_custom_call.1} parent=1 // pred_fallthru
      _
    %p62 = scmp.eq.s32.totalorder 0, 0
    // Predicated region
    $region34: #{tpu_custom_call.1} parent=1 // pred_check
      %p63 = pneg %p62
    $region35: #{tpu_custom_call.1} parent=1 // pred_check_branch
      %65 = sbr.rel (%p63) target = $region37
    $region36: #{tpu_custom_call.1} parent=1 // pred_region
      %vm66 = vcmask 261120
      %67 = vst.msk [vmem:[#allocation2] sm:$0xff] %vm66, 0.0
    $region37: #{tpu_custom_call.1} parent=1 // pred_fallthru
      _
    %v68 = vld [vmem:[#allocation2] sm:$0xff]
    %v69 = vld [vmem:[#allocation3] sm:$0xff]
    %v70 = vld [vmem:[#allocation3 + $0x8] sm:$0xff]
    %v71 = vld [vmem:[#allocation3 + $0x10] sm:$0xff]
    %v72 = vld [vmem:[#allocation3 + $0x18] sm:$0xff]
    %v73 = vld [vmem:[#allocation3 + $0x20] sm:$0xff]
    %v74 = vld [vmem:[#allocation3 + $0x28] sm:$0xff]
    %v75 = vld [vmem:[#allocation3 + $0x30] sm:$0xff]
    %v76 = vld [vmem:[#allocation3 + $0x38] sm:$0xff]
    %vm77 = vcmask 261120
    %v78 = vsel %vm77, %v69, 0.0
    %v79 = vrot.slane %v78, 4
    %v80 = vadd.f32 %v78, %v79
    %v81 = vrot.slane %v80, 2
    %v82 = vadd.f32 %v80, %v81
    %v83 = vrot.slane %v82, 1
    %v84 = vadd.f32 %v82, %v83
    %v85 = vsel %vm77, %v70, 0.0
    %v86 = vrot.slane %v85, 4
    %v87 = vadd.f32 %v85, %v86
    %v88 = vrot.slane %v87, 2
    %v89 = vadd.f32 %v87, %v88
    %v90 = vrot.slane %v89, 1
    %v91 = vadd.f32 %v89, %v90
    %v92 = vsel %vm77, %v71, 0.0
    %v93 = vrot.slane %v92, 4
    %v94 = vadd.f32 %v92, %v93
    %v95 = vrot.slane %v94, 2
    %v96 = vadd.f32 %v94, %v95
    %v97 = vrot.slane %v96, 1
    %v98 = vadd.f32 %v96, %v97
    %v99 = vsel %vm77, %v72, 0.0
    %v100 = vrot.slane %v99, 4
    %v101 = vadd.f32 %v99, %v100
    %v102 = vrot.slane %v101, 2
    %v103 = vadd.f32 %v101, %v102
    %v104 = vrot.slane %v103, 1
    %v105 = vadd.f32 %v103, %v104
    %v106 = vsel %vm77, %v73, 0.0
    %v107 = vrot.slane %v106, 4
    %v108 = vadd.f32 %v106, %v107
    %v109 = vrot.slane %v108, 2
    %v110 = vadd.f32 %v108, %v109
    %v111 = vrot.slane %v110, 1
    %v112 = vadd.f32 %v110, %v111
    %v113 = vsel %vm77, %v74, 0.0
    %v114 = vrot.slane %v113, 4
    %v115 = vadd.f32 %v113, %v114
    %v116 = vrot.slane %v115, 2
    %v117 = vadd.f32 %v115, %v116
    %v118 = vrot.slane %v117, 1
    %v119 = vadd.f32 %v117, %v118
    %v120 = vsel %vm77, %v75, 0.0
    %v121 = vrot.slane %v120, 4
    %v122 = vadd.f32 %v120, %v121
    %v123 = vrot.slane %v122, 2
    %v124 = vadd.f32 %v122, %v123
    %v125 = vrot.slane %v124, 1
    %v126 = vadd.f32 %v124, %v125
    %v127 = vsel %vm77, %v76, 0.0
    %v128 = vrot.slane %v127, 4
    %v129 = vadd.f32 %v127, %v128
    %v130 = vrot.slane %v129, 2
    %v131 = vadd.f32 %v129, %v130
    %v132 = vrot.slane %v131, 1
    %v133 = vadd.f32 %v131, %v132
    %vm142 = vcmask 1041409
    %v143 = vsel %vm142, %v91, %v84
    %vm144 = vcmask 1042434
    %v145 = vsel %vm144, %v98, %v143
    %vm146 = vcmask 1043459
    %v147 = vsel %vm146, %v105, %v145
    %vm148 = vcmask 1044484
    %v149 = vsel %vm148, %v112, %v147
    %vm150 = vcmask 1045509
    %v151 = vsel %vm150, %v119, %v149
    %vm152 = vcmask 1046534
    %v153 = vsel %vm152, %v126, %v151
    %vm154 = vcmask 1047559
    %v155 = vsel %vm154, %v133, %v153
    %v157 = vadd.f32 %v68, %v155
    %158 = vst.msk [vmem:[#allocation2] sm:$0xff] %vm77, %v157
    // Predicated region
    $region38: #{tpu_custom_call.1} parent=1 // pred_check
      %p159 = pneg %p62
    $region39: #{tpu_custom_call.1} parent=1 // pred_check_branch
      %161 = sbr.rel (%p159) target = $region41
    $region40: #{tpu_custom_call.1} parent=1 // pred_region
      %v162 = vld [vmem:[#allocation2] sm:$0xff]
      %v163 = vld [vmem:[#allocation6] sm:$0xff]
      %v164 = vld [vmem:[#allocation6 + $0x8] sm:$0xff]
      %v165 = vld [vmem:[#allocation6 + $0x10] sm:$0xff]
      %v166 = vld [vmem:[#allocation6 + $0x18] sm:$0xff]
      %v167 = vld [vmem:[%s2] sm:$0x1]
      %v169 = vlaneseq
      %v170 = vshrl.u32 %v169, 7
      %v171 = vsub.s32 0, %v170
      %v172 = vrot.slane %v167, %v171
      %v175 = vsel %vm77, %v162, 0
      %177 = vmatprep.subr.mxu0 0.0
      %178 = vmatpush1.msra.mxu0 %v163
      %179 = vmatprep.subr.mxu0 0.0
      %180 = vmatpush1.msra.mxu0 %v164
      %181 = vmatprep.subr.mxu0 0.0
      %182 = vmatpush1.msra.mxu0 %v165
      %183 = vmatprep.subr.mxu0 0.0
      %184 = vmatpush1.msra.mxu0 %v166
      %185 = vmatprep.subr.mxu0 0.0
      %186 = vmatpush1.msra.mxu0 0.0
      %187 = vmatprep.subr.mxu0 0.0
      %188 = vmatpush1.msra.mxu0 0.0
      %189 = vmatprep.subr.mxu0 0.0
      %190 = vmatpush1.msra.mxu0 0.0
      %191 = vmatprep.subr.mxu0 0.0
      %192 = vmatpush1.msra.mxu0 0.0
      %193 = vmatprep.subr.mxu0 0.0
      %194 = vmatpush1.msra.mxu0 0.0
      %195 = vmatprep.subr.mxu0 0.0
      %196 = vmatpush1.msra.mxu0 0.0
      %197 = vmatprep.subr.mxu0 0.0
      %198 = vmatpush1.msra.mxu0 0.0
      %199 = vmatprep.subr.mxu0 0.0
      %200 = vmatpush1.msra.mxu0 0.0
      %201 = vmatprep.subr.mxu0 0.0
      %202 = vmatpush1.msra.mxu0 0.0
      %203 = vmatprep.subr.mxu0 0.0
      %204 = vmatpush1.msra.mxu0 0.0
      %205 = vmatprep.subr.mxu0 0.0
      %206 = vmatpush1.msra.mxu0 0.0
      %207 = vmatprep.subr.mxu0 0.0
      %208 = vmatpush1.msra.mxu0 0.0
      %209 = vmatprep.subr.mxu0 0.0
      %210 = vmatpush1.msra.mxu0 0.0
      %211 = vmatprep.subr.mxu0 0.0
      %212 = vmatpush1.msra.mxu0 0.0
      %213 = vmatprep.subr.mxu0 0.0
      %214 = vmatpush1.msra.mxu0 0.0
      %215 = vmatprep.subr.mxu0 0.0
      %216 = vmatpush1.msra.mxu0 0.0
      %217 = vmatprep.subr.mxu0 0.0
      %218 = vmatpush1.msra.mxu0 0.0
      %219 = vmatprep.subr.mxu0 0.0
      %220 = vmatpush1.msra.mxu0 0.0
      %221 = vmatprep.subr.mxu0 0.0
      %222 = vmatpush1.msra.mxu0 0.0
      %223 = vmatprep.subr.mxu0 0.0
      %224 = vmatpush1.msra.mxu0 0.0
      %225 = vmatprep.subr.mxu0 0.0
      %226 = vmatpush1.msra.mxu0 0.0
      %227 = vmatprep.subr.mxu0 0.0
      %228 = vmatpush1.msra.mxu0 0.0
      %229 = vmatprep.subr.mxu0 0.0
      %230 = vmatpush1.msra.mxu0 0.0
      %231 = vmatprep.subr.mxu0 0.0
      %232 = vmatpush1.msra.mxu0 0.0
      %233 = vmatprep.subr.mxu0 0.0
      %234 = vmatpush1.msra.mxu0 0.0
      %235 = vmatprep.subr.mxu0 0.0
      %236 = vmatpush1.msra.mxu0 0.0
      %237 = vmatprep.subr.mxu0 0.0
      %238 = vmatpush1.msra.mxu0 0.0
      %239 = vmatprep.subr.mxu0 0.0
      %240 = vmatpush1.msra.mxu0 0.0
      %241 = vmatprep.mubr.f32.mxu0 0.0
      %242 = vmatmul.mubr.f32.gmra.mrb[0].mxu0 %v175
      %v243 = vpop.f32.mrb[0].mxu0
      %v244 = vadd.f32 %v172, %v243
      %v245 = vpop.f32.mrb[0].mxu0
      %246 = vdwg.mxu0
      %v247 = vmax.f32 %v244, 0.0
      %v248 = vld [vmem:[#allocation8] sm:$0xff]
      %v249 = vld [vmem:[#allocation8 + $0x8] sm:$0xff]
      %v250 = vld [vmem:[#allocation8 + $0x10] sm:$0xff]
      %v251 = vld [vmem:[#allocation8 + $0x18] sm:$0xff]
      %v252 = vld [vmem:[#allocation8 + $0x20] sm:$0xff]
      %v253 = vld [vmem:[#allocation8 + $0x28] sm:$0xff]
      %v254 = vld [vmem:[#allocation8 + $0x30] sm:$0xff]
      %v255 = vld [vmem:[#allocation8 + $0x38] sm:$0xff]
      %v256 = vld [vmem:[#allocation8 + $0x40] sm:$0xff]
      %v257 = vld [vmem:[#allocation8 + $0x48] sm:$0xff]
      %v258 = vld [vmem:[#allocation8 + $0x50] sm:$0xff]
      %v259 = vld [vmem:[#allocation8 + $0x58] sm:$0xff]
      %v260 = vld [vmem:[#allocation8 + $0x60] sm:$0xff]
      %v261 = vld [vmem:[#allocation8 + $0x68] sm:$0xff]
      %v262 = vld [vmem:[#allocation8 + $0x70] sm:$0xff]
      %v263 = vld [vmem:[#allocation8 + $0x78] sm:$0xff]
      %v264 = vld [vmem:[%s4] sm:$0x1]
      %v266 = vlaneseq
      %v267 = vshrl.u32 %v266, 7
      %v268 = vsub.s32 0, %v267
      %v269 = vrot.slane %v264, %v268
      %271 = vmatprep.subr.mxu0 0.0
      %272 = vmatpush1.msra.mxu0 %v248
      %273 = vmatprep.subr.mxu0 0.0
      %274 = vmatpush1.msra.mxu0 %v249
      %275 = vmatprep.subr.mxu0 0.0
      %276 = vmatpush1.msra.mxu0 %v250
      %277 = vmatprep.subr.mxu0 0.0
      %278 = vmatpush1.msra.mxu0 %v251
      %279 = vmatprep.subr.mxu0 0.0
      %280 = vmatpush1.msra.mxu0 %v252
      %281 = vmatprep.subr.mxu0 0.0
      %282 = vmatpush1.msra.mxu0 %v253
      %283 = vmatprep.subr.mxu0 0.0
      %284 = vmatpush1.msra.mxu0 %v254
      %285 = vmatprep.subr.mxu0 0.0
      %286 = vmatpush1.msra.mxu0 %v255
      %287 = vmatprep.subr.mxu0 0.0
      %288 = vmatpush1.msra.mxu0 %v256
      %289 = vmatprep.subr.mxu0 0.0
      %290 = vmatpush1.msra.mxu0 %v257
      %291 = vmatprep.subr.mxu0 0.0
      %292 = vmatpush1.msra.mxu0 %v258
      %293 = vmatprep.subr.mxu0 0.0
      %294 = vmatpush1.msra.mxu0 %v259
      %295 = vmatprep.subr.mxu0 0.0
      %296 = vmatpush1.msra.mxu0 %v260
      %297 = vmatprep.subr.mxu0 0.0
      %298 = vmatpush1.msra.mxu0 %v261
      %299 = vmatprep.subr.mxu0 0.0
      %300 = vmatpush1.msra.mxu0 %v262
      %301 = vmatprep.subr.mxu0 0.0
      %302 = vmatpush1.msra.mxu0 %v263
      %303 = vmatprep.subr.mxu0 0.0
      %304 = vmatpush1.msra.mxu0 0.0
      %305 = vmatprep.subr.mxu0 0.0
      %306 = vmatpush1.msra.mxu0 0.0
      %307 = vmatprep.subr.mxu0 0.0
      %308 = vmatpush1.msra.mxu0 0.0
      %309 = vmatprep.subr.mxu0 0.0
      %310 = vmatpush1.msra.mxu0 0.0
      %311 = vmatprep.subr.mxu0 0.0
      %312 = vmatpush1.msra.mxu0 0.0
      %313 = vmatprep.subr.mxu0 0.0
      %314 = vmatpush1.msra.mxu0 0.0
      %315 = vmatprep.subr.mxu0 0.0
      %316 = vmatpush1.msra.mxu0 0.0
      %317 = vmatprep.subr.mxu0 0.0
      %318 = vmatpush1.msra.mxu0 0.0
      %319 = vmatprep.subr.mxu0 0.0
      %320 = vmatpush1.msra.mxu0 0.0
      %321 = vmatprep.subr.mxu0 0.0
      %322 = vmatpush1.msra.mxu0 0.0
      %323 = vmatprep.subr.mxu0 0.0
      %324 = vmatpush1.msra.mxu0 0.0
      %325 = vmatprep.subr.mxu0 0.0
      %326 = vmatpush1.msra.mxu0 0.0
      %327 = vmatprep.subr.mxu0 0.0
      %328 = vmatpush1.msra.mxu0 0.0
      %329 = vmatprep.subr.mxu0 0.0
      %330 = vmatpush1.msra.mxu0 0.0
      %331 = vmatprep.subr.mxu0 0.0
      %332 = vmatpush1.msra.mxu0 0.0
      %333 = vmatprep.subr.mxu0 0.0
      %334 = vmatpush1.msra.mxu0 0.0
      %335 = vmatprep.mubr.f32.mxu0 0.0
      %336 = vmatmul.mubr.f32.gmra.mrb[0].mxu0 %v247
      %v337 = vpop.f32.mrb[0].mxu0
      %v338 = vadd.f32 %v269, %v337
      %v339 = vpop.f32.mrb[0].mxu0
      %340 = vdwg.mxu0
      %341 = vst [vmem:[#allocation9] sm:$0xff] %v338
    $region41: #{tpu_custom_call.1} parent=1 // pred_fallthru
      _
    // Predicated region
    $region42: #{tpu_custom_call.1} parent=1 // pred_check
      _
    $region43: #{tpu_custom_call.1} parent=1 // pred_check_branch
      %343 = sbr.rel (0) target = $region45
    $region44: #{tpu_custom_call.1} parent=1 // pred_region
      %s345 = ssub.s32 128, 128
      %346 = vsyncadd [#allocation5], %s345
      %s348 = sshll.u32 [#allocation9], 4
      %s349 = int_to_ptr.vmem [resolvable:$true] %s348
      %351 = dma.vmem_to_hbm [thread:$0]  %s349, 128, %s5, [#allocation5]
    $region45: #{tpu_custom_call.1} parent=1 // pred_fallthru
      _
    // Predicated region
    $region46: #{tpu_custom_call.1} parent=1 // pred_check
      _
    $region47: #{tpu_custom_call.1} parent=1 // pred_check_branch
      %353 = sbr.rel (0) target = $region49
    $region48: #{tpu_custom_call.1} parent=1 // pred_region
      %354 = dma.done [#allocation5], 128
    $region49: #{tpu_custom_call.1} parent=1 // pred_fallthru
      _
    %355 = vsyncpa [#allocation4], 1
    %356 = vsyncpa [#allocation7], 1
    %357 = vsyncpa [#allocation5], 1

</llo_original>
